<compile_context>
chip_gen: v7x
topology: tpu7x:2x2x1
jax: 0.10.0
libtpu: 0.0.40
codegen_flags: <defaults>
</compile_context>

<pallas_src>
import functools

import jax
import jax.numpy as jnp
from jax.experimental import pallas as pl
from jax.experimental.pallas import tpu as pltpu

LEAKY_SLOPE = 0.01  # nn.LeakyReLU() default negative_slope


def _pool_kernel(x_ref, sum_ref, max_ref, *,
                 hw_total, hw_tile, steps_per_split, needs_mask):
    """Accumulate per-channel sum and max over the spatial (lane) axis.

    Grid: (n_split, n_batch_blocks, steps_per_split)
    x_ref  : (Bt, C, hw_tile)   native-dtype block of the flattened input
    sum_ref: (1, Bt, C) f32     running sum for this (split, batch-block)
    max_ref: (1, Bt, C) f32     running max for this (split, batch-block)
    """
    s = pl.program_id(0)
    h = pl.program_id(2)

    x = x_ref[...]                                        # no f32 copy of the tile

    if needs_mask:
        # Mask out-of-range lanes: partial tail tile and/or ghost steps whose
        # logical offset is past HW (their DMA index was clamped in x_map).
        base = (s * steps_per_split + h) * hw_tile
        lane = jax.lax.broadcasted_iota(jnp.int32, x.shape, dimension=2)
        valid = (base + lane) < hw_total
        part_sum = jnp.sum(jnp.where(valid, x, jnp.zeros_like(x)),
                           axis=2, dtype=jnp.float32)     # (Bt, C)
        part_max = jnp.max(jnp.where(valid, x, jnp.full_like(x, -jnp.inf)),
                           axis=2).astype(jnp.float32)    # (Bt, C)
    else:
        part_sum = jnp.sum(x, axis=2, dtype=jnp.float32)  # f32 accumulation
        part_max = jnp.max(x, axis=2).astype(jnp.float32)

    @pl.when(h == 0)
    def _():                                              # init accumulators
        sum_ref[0] = part_sum
        max_ref[0] = part_max

    @pl.when(h > 0)
    def _():                                              # accumulate partials
        sum_ref[0] = sum_ref[0] + part_sum
        max_ref[0] = jnp.maximum(max_ref[0], part_max)


def _tpu_target():
    """Per-generation (num_tensorcores, target x-tile bytes, vmem_limit_bytes)."""
    kind = ""
    try:
        kind = jax.devices()[0].device_kind.lower()
    except Exception:
        pass
    if "v6" in kind:
        # v6e: 1 TC, 128 MiB physical VMEM, ~1.35 TB/s HBM.
        return 1, 16 * 1024 * 1024, 64 * 1024 * 1024
    if "v5" in kind:
        # v5e/v5p: 1 TC, 128 MiB physical VMEM (16 MiB scoped default -> raise).
        return 1, 12 * 1024 * 1024, 48 * 1024 * 1024
    if "7" in kind:
        # v7x: 2 TCs/chip, only 64 MiB physical VMEM per TC, 3.2 TB/s HBM.
        return 2, 12 * 1024 * 1024, 48 * 1024 * 1024
    # v4 / unknown: conservative.
    return 1, 8 * 1024 * 1024, 40 * 1024 * 1024


def _choose_tiles(B, C, HW, itemsize, num_cores, target_bytes):
    """Pick (bt, hw_tile, n_split, steps_per_split, n_hw, needs_mask).

    Rules:
      - output block (1, bt, C): bt % 8 == 0 or bt == B
      - input block (bt, C, hw_tile): hw_tile % 128 == 0 or hw_tile == HW
      - grow hw_tile (not bt) toward target_bytes; keep bt*C*4B <= ~64 KiB
      - on multi-TC chips expose >= num_cores parallel blocks
    """
    # --- batch block ---
    bt = 8 if B % 8 == 0 else B
    # Grow bt only when even the whole-HW block is still below the tile target
    # (HW alone cannot amortize per-step overhead).  Keep (bt,C) partials small
    # and, on multi-TC chips, keep >= num_cores parallel batch blocks.
    while (B % (bt * 2) == 0
           and B // (bt * 2) >= num_cores
           and (bt * 2) * C * 4 <= 64 * 1024
           and (bt * 2) * C * HW * itemsize <= target_bytes):
        bt *= 2

    # --- spatial tile: prefer growing hw_tile over bt ---
    row_bytes = bt * C * itemsize
    if bt * C * HW * itemsize <= target_bytes:
        hw_tile = HW
    else:
        hw_tile = (target_bytes // row_bytes) // 128 * 128
        hw_tile = max(hw_tile, 128)
        hw_tile = min(hw_tile, HW)           # hw_tile is 128-multiple or full HW
    n_hw = pl.cdiv(HW, hw_tile)
    n_batch = pl.cdiv(B, bt)

    # --- v7x: make sure both TensorCores get work (>= num_cores parallel blocks)
    n_split = 1
    if num_cores > 1 and n_batch < num_cores:
        if n_hw < num_cores and HW > (num_cores - 1) * 128:
            hw_tile = min(HW, pl.cdiv(pl.cdiv(HW, num_cores), 128) * 128)
            n_hw = pl.cdiv(HW, hw_tile)
        if n_hw >= num_cores:
            n_split = num_cores
    steps_per_split = pl.cdiv(n_hw, n_split)

    needs_mask = (hw_tile * n_hw != HW) or (steps_per_split * n_split != n_hw)
    return bt, hw_tile, n_split, steps_per_split, n_hw, needs_mask


def channel_attention(x, w1, w2):
    """x: (B, C, H, W) NCHW; w1: (C//16, C); w2: (C, C//16) -> gate (B, C, 1, 1)."""
    B, C, H, W = x.shape
    HW = H * W
    x_flat = x.reshape(B, C, HW)

    num_cores, target_bytes, vmem_limit = _tpu_target()
    bt, hw_tile, n_split, steps_per_split, n_hw, needs_mask = _choose_tiles(
        B, C, HW, x.dtype.itemsize, num_cores, target_bytes)

    n_batch = pl.cdiv(B, bt)
    grid = (n_split, n_batch, steps_per_split)

    # Double-buffered x tiles plus small output blocks and slack.
    tile_bytes = bt * C * hw_tile * x.dtype.itemsize
    vmem_limit = int(max(vmem_limit, 2 * tile_bytes + (8 << 20)))

    clamp_step = (steps_per_split * n_split != n_hw)

    def x_map(s, b, h):
        step = s * steps_per_split + h
        if clamp_step:
            # Ghost steps (past the last real hw block) reread the last block;
            # the kernel masks them out entirely.
            step = jnp.minimum(step, n_hw - 1)
        return (b, 0, step)

    def out_map(s, b, h):
        return (s, b, 0)

    kernel = functools.partial(
        _pool_kernel, hw_total=HW, hw_tile=hw_tile,
        steps_per_split=steps_per_split, needs_mask=needs_mask)

    sums, maxes = pl.pallas_call(
        kernel,
        out_shape=(jax.ShapeDtypeStruct((n_split, B, C), jnp.float32),
                   jax.ShapeDtypeStruct((n_split, B, C), jnp.float32)),
        grid_spec=pltpu.PrefetchScalarGridSpec(
            num_scalar_prefetch=0,
            grid=grid,
            in_specs=[pl.BlockSpec((bt, C, hw_tile), x_map)],
            out_specs=[pl.BlockSpec((1, bt, C), out_map),
                       pl.BlockSpec((1, bt, C), out_map)],
        ),
        compiler_params=pltpu.CompilerParams(
            dimension_semantics=("parallel", "parallel", "arbitrary"),
            vmem_limit_bytes=vmem_limit),
    )(x_flat)

    # Combine per-split partials, then the tiny fc1/LeakyReLU/fc2/sigmoid MLP in
    # plain XLA (stack avg/max branches so fc1/fc2 run once on (2B, C)).
    avg = sums.sum(axis=0) * jnp.float32(1.0 / HW)            # (B, C)
    mx = maxes.max(axis=0)                                    # (B, C)
    p = jnp.concatenate([avg, mx], axis=0)                    # (2B, C) f32
    hdn = p @ w1.astype(jnp.float32).T                        # (2B, C//16)
    hdn = jnp.where(hdn > 0, hdn, LEAKY_SLOPE * hdn)          # LeakyReLU
    o = hdn @ w2.astype(jnp.float32).T                        # (2B, C)
    out = jax.nn.sigmoid(o[:B] + o[B:])                       # (B, C)
    return out.reshape(B, C, 1, 1).astype(x.dtype)


def channel_attention_ref(x, w1, w2):
    """Pure-JAX reference mirroring the PyTorch forward."""
    avg = jnp.mean(x, axis=(2, 3))                            # (B, C)
    mx = jnp.max(x, axis=(2, 3))                              # (B, C)

    def mlp(p):
        h = p @ w1.T
        h = jnp.where(h > 0, h, LEAKY_SLOPE * h)
        return h @ w2.T

    out = jax.nn.sigmoid(mlp(avg) + mlp(mx))
    return out[:, :, None, None]


if __name__ == "__main__":
    key = jax.random.PRNGKey(0)
    B, C, H, W = 2, 64, 16, 16                                # in_planes=64 -> hidden=4
    C_hid = C // 16

    kx, k1, k2 = jax.random.split(key, 3)
    x = jax.random.normal(kx, (B, C, H, W), dtype=jnp.float32)
    # Deterministic weights (kaiming-ish scale); 1x1 conv weights squeezed to 2D.
    w1 = jax.random.normal(k1, (C_hid, C), dtype=jnp.float32) * (2.0 / C) ** 0.5
    w2 = jax.random.normal(k2, (C, C_hid), dtype=jnp.float32) * (2.0 / C_hid) ** 0.5

    out = channel_attention(x, w1, w2)
    out = jax.block_until_ready(out)

    ref = channel_attention_ref(x, w1, w2)
    assert out.shape == (B, C, 1, 1), out.shape
    assert jnp.allclose(out, ref, atol=1e-5, rtol=1e-5), (
        float(jnp.max(jnp.abs(out - ref))))

    print("KERNEL_OK")
</pallas_src>

<mosaic_0001>
module attributes {stable_mosaic.version = 11 : i64} {
  func.func @_pool_kernel(%arg0: i32, %arg1: i32, %arg2: i32, %arg3: memref<2x64x256xf32, #tpu.memory_space<vmem>>, %arg4: memref<1x2x64xf32, #tpu.memory_space<vmem>>, %arg5: memref<1x2x64xf32, #tpu.memory_space<vmem>>) attributes {dimension_semantics = [#tpu.dimension_semantics<parallel>, #tpu.dimension_semantics<parallel>, #tpu.dimension_semantics<arbitrary>], iteration_bounds = array<i64: 1, 1, 1>, scalar_prefetch = 0 : i64, scratch_operands = 0 : i64, tpu.core_type = #tpu.core_type<tc>, window_params = [{transform_indices = @transform_0, window_bounds = array<i64: 2, 64, 256>}, {transform_indices = @transform_1, window_bounds = array<i64: 1, 2, 64>}, {transform_indices = @transform_2, window_bounds = array<i64: 1, 2, 64>}]} {
    %c0 = arith.constant 0 : index
    %c0_0 = arith.constant 0 : index
    %c0_1 = arith.constant 0 : index
    %0 = vector.load %arg3[%c0, %c0_0, %c0_1] : memref<2x64x256xf32, #tpu.memory_space<vmem>>, vector<2x64x256xf32>
    %cst = arith.constant dense<0.000000e+00> : vector<2x64xf32>
    %1 = vector.multi_reduction <add>, %0, %cst [2] : vector<2x64x256xf32> to vector<2x64xf32>
    %cst_2 = arith.constant dense<0xFF800000> : vector<2x64xf32>
    %2 = vector.multi_reduction <maximumf>, %0, %cst_2 [2] : vector<2x64x256xf32> to vector<2x64xf32>
    %c0_i32 = arith.constant 0 : i32
    %3 = arith.cmpi eq, %arg2, %c0_i32 : i32
    %4 = arith.extui %3 : i1 to i32
    %c0_i32_3 = arith.constant 0 : i32
    %5 = arith.cmpi ne, %4, %c0_i32_3 : i32
    scf.if %5 {
      %c0_6 = arith.constant 0 : index
      %c0_7 = arith.constant 0 : index
      %c0_8 = arith.constant 0 : index
      %9 = vector.load %arg4[%c0_6, %c0_7, %c0_8] : memref<1x2x64xf32, #tpu.memory_space<vmem>>, vector<1x2x64xf32>
      %10 = vector.shape_cast %9 : vector<1x2x64xf32> to vector<2x64xf32>
      %11 = vector.shape_cast %1 : vector<2x64xf32> to vector<1x2x64xf32>
      tpu.vector_store %arg4[%c0_6, %c0_7, %c0_8], %11 {strides = array<i32>} : memref<1x2x64xf32, #tpu.memory_space<vmem>>, vector<1x2x64xf32>,
      %c0_9 = arith.constant 0 : index
      %c0_10 = arith.constant 0 : index
      %c0_11 = arith.constant 0 : index
      %12 = vector.load %arg5[%c0_9, %c0_10, %c0_11] : memref<1x2x64xf32, #tpu.memory_space<vmem>>, vector<1x2x64xf32>
      %13 = vector.shape_cast %12 : vector<1x2x64xf32> to vector<2x64xf32>
      %14 = vector.shape_cast %2 : vector<2x64xf32> to vector<1x2x64xf32>
      tpu.vector_store %arg5[%c0_9, %c0_10, %c0_11], %14 {strides = array<i32>} : memref<1x2x64xf32, #tpu.memory_space<vmem>>, vector<1x2x64xf32>,
    } else {
    }
    %c0_i32_4 = arith.constant 0 : i32
    %6 = arith.cmpi sgt, %arg2, %c0_i32_4 : i32
    %7 = arith.extui %6 : i1 to i32
    %c0_i32_5 = arith.constant 0 : i32
    %8 = arith.cmpi ne, %7, %c0_i32_5 : i32
    scf.if %8 {
      %c0_6 = arith.constant 0 : index
      %c0_7 = arith.constant 0 : index
      %c0_8 = arith.constant 0 : index
      %9 = vector.load %arg4[%c0_6, %c0_7, %c0_8] : memref<1x2x64xf32, #tpu.memory_space<vmem>>, vector<1x2x64xf32>
      %10 = vector.shape_cast %9 : vector<1x2x64xf32> to vector<2x64xf32>
      %11 = arith.addf %10, %1 : vector<2x64xf32>
      %c0_9 = arith.constant 0 : index
      %c0_10 = arith.constant 0 : index
      %c0_11 = arith.constant 0 : index
      %12 = vector.load %arg4[%c0_9, %c0_10, %c0_11] : memref<1x2x64xf32, #tpu.memory_space<vmem>>, vector<1x2x64xf32>
      %13 = vector.shape_cast %12 : vector<1x2x64xf32> to vector<2x64xf32>
      %14 = vector.shape_cast %11 : vector<2x64xf32> to vector<1x2x64xf32>
      tpu.vector_store %arg4[%c0_9, %c0_10, %c0_11], %14 {strides = array<i32>} : memref<1x2x64xf32, #tpu.memory_space<vmem>>, vector<1x2x64xf32>,
      %c0_12 = arith.constant 0 : index
      %c0_13 = arith.constant 0 : index
      %c0_14 = arith.constant 0 : index
      %15 = vector.load %arg5[%c0_12, %c0_13, %c0_14] : memref<1x2x64xf32, #tpu.memory_space<vmem>>, vector<1x2x64xf32>
      %16 = vector.shape_cast %15 : vector<1x2x64xf32> to vector<2x64xf32>
      %17 = arith.maximumf %16, %2 : vector<2x64xf32>
      %c0_15 = arith.constant 0 : index
      %c0_16 = arith.constant 0 : index
      %c0_17 = arith.constant 0 : index
      %18 = vector.load %arg5[%c0_15, %c0_16, %c0_17] : memref<1x2x64xf32, #tpu.memory_space<vmem>>, vector<1x2x64xf32>
      %19 = vector.shape_cast %18 : vector<1x2x64xf32> to vector<2x64xf32>
      %20 = vector.shape_cast %17 : vector<2x64xf32> to vector<1x2x64xf32>
      tpu.vector_store %arg5[%c0_15, %c0_16, %c0_17], %20 {strides = array<i32>} : memref<1x2x64xf32, #tpu.memory_space<vmem>>, vector<1x2x64xf32>,
    } else {
    }
    return
  }
  func.func @transform_0(%arg0: i32, %arg1: i32, %arg2: i32) -> (i32, i32, i32) {
    %c1_i32 = arith.constant 1 : i32
    %0 = arith.muli %arg0, %c1_i32 : i32
    %1 = arith.addi %0, %arg2 : i32
    %c0_i32 = arith.constant 0 : i32
    %c0_i32_0 = arith.constant 0 : i32
    return %arg1, %c0_i32, %1 : i32, i32, i32
  }
  func.func @transform_1(%arg0: i32, %arg1: i32, %arg2: i32) -> (i32, i32, i32) {
    %c0_i32 = arith.constant 0 : i32
    %c0_i32_0 = arith.constant 0 : i32
    return %arg0, %arg1, %c0_i32 : i32, i32, i32
  }
  func.func @transform_2(%arg0: i32, %arg1: i32, %arg2: i32) -> (i32, i32, i32) {
    %c0_i32 = arith.constant 0 : i32
    %c0_i32_0 = arith.constant 0 : i32
    return %arg0, %arg1, %c0_i32 : i32, i32, i32
  }
}

</mosaic_0001>

<llo_original>
// kernel: tpu_custom_call.1
$region0: #{tpu_custom_call.1}
  #allocation0 [shape = 'u32[]', space=smem, size = 0x4, offset = 0x4, fixed_abs, tag = 'smem constant byte address 0x4 - core index']
  #allocation1 [shape = 'u32[144,128]{1,0:T(1,128)}', space=vmem, size = 0x12000, scoped, tag = 'internal scratch']
  %s0 = inlined_call_operand.hbm [shape: f32[2,64,256], index: 0, kind: input, shape index: {}]
  %s1 = inlined_call_operand.hbm [shape: f32[1,2,64], index: 1, kind: output, shape index: {0}]
  %s2 = inlined_call_operand.hbm [shape: f32[1,2,64], index: 2, kind: output, shape index: {1}]
  %3 = xla_tuple %s1, %s2
  %s4 = sld [smem:[#allocation0]]
  $region34: #{tpu_custom_call.1} parent=0
    _
  %s6 = ssub.s32 1, %s4
  %s7 = scalar_select 0, %s6, %s4
  $region1: #{tpu_custom_call.1} parent=0
    #allocation2 [shape = 'u8[131072]{0}', space=vmem, size = 0x20000, scoped, tag = 'input window, operand 0, single buffered']
    #allocation3 [shape = 's32[1]{0}', space=sflag, size = 0x4, scoped, tag = 'scoped memory for tpu_custom_call.1']
    #allocation4 [shape = 's32[1]{0}', space=sflag, size = 0x4, scoped, tag = 'scoped memory for tpu_custom_call.1']
    #allocation5 [shape = 'u8[1024]{0}', space=vmem, size = 0x400, scoped, tag = 'output window, operand 0, single buffered']
    #allocation6 [shape = 'u8[1024]{0}', space=vmem, size = 0x400, scoped, tag = 'output window, operand 1, single buffered']
    #allocation7 [shape = 's32[1]{0}', space=sflag, size = 0x4, scoped, tag = 'scoped memory for tpu_custom_call.1']
    %8 = vsyncpa [#allocation3], 0
    %9 = vsyncpa [#allocation4], 0
    %10 = vsyncpa [#allocation7], 0
    // Predicated region
    $region2: #{tpu_custom_call.1} parent=1 // pred_check
      _
    $region3: #{tpu_custom_call.1} parent=1 // pred_check_branch
      %12 = sbr.rel (0) target = $region5
    $region4: #{tpu_custom_call.1} parent=1 // pred_region
      %s13 = sadd.s32 0, 0
      %s14 = smul.u32 2, %s13
      %s16 = ssub.s32 4096, 4096
      %17 = vsyncadd [#allocation3], %s16
      %s18 = smul.addr %s14, 128
      %s19 = scalar_lea.hbm %s0, %s18
      %s20 = sshll.u32 [#allocation2], 4
      %s21 = int_to_ptr.vmem [resolvable:$true] %s20
      %26 = dma.hbm_to_vmem [thread:$0]  %s19, 4096, %s21, [#allocation3], 256, 256, 16
    $region5: #{tpu_custom_call.1} parent=1 // pred_fallthru
      _
    // Predicated region
    $region6: #{tpu_custom_call.1} parent=1 // pred_check
      _
    $region7: #{tpu_custom_call.1} parent=1 // pred_check_branch
      %28 = sbr.rel (0) target = $region9
    $region8: #{tpu_custom_call.1} parent=1 // pred_region
      %29 = dma.done [#allocation3], 4096
    $region9: #{tpu_custom_call.1} parent=1 // pred_fallthru
      _
    %s30 = sadd.s32 0, 0
    %s31 = smul.u32 2, %s30
    %v32 = vld [vmem:[#allocation2] sm:$0xff]
    %v33 = vld [vmem:[#allocation2 + $0x8] sm:$0xff]
    %v34 = vld [vmem:[#allocation2 + $0x10] sm:$0xff]
    %v35 = vld [vmem:[#allocation2 + $0x18] sm:$0xff]
    %v36 = vld [vmem:[#allocation2 + $0x20] sm:$0xff]
    %v37 = vld [vmem:[#allocation2 + $0x28] sm:$0xff]
    %v38 = vld [vmem:[#allocation2 + $0x30] sm:$0xff]
    %v39 = vld [vmem:[#allocation2 + $0x38] sm:$0xff]
    %v40 = vld [vmem:[#allocation2 + $0x40] sm:$0xff]
    %v41 = vld [vmem:[#allocation2 + $0x48] sm:$0xff]
    %v42 = vld [vmem:[#allocation2 + $0x50] sm:$0xff]
    %v43 = vld [vmem:[#allocation2 + $0x58] sm:$0xff]
    %v44 = vld [vmem:[#allocation2 + $0x60] sm:$0xff]
    %v45 = vld [vmem:[#allocation2 + $0x68] sm:$0xff]
    %v46 = vld [vmem:[#allocation2 + $0x70] sm:$0xff]
    %v47 = vld [vmem:[#allocation2 + $0x78] sm:$0xff]
    %v48 = vld [vmem:[#allocation2 + $0x80] sm:$0xff]
    %v49 = vld [vmem:[#allocation2 + $0x88] sm:$0xff]
    %v50 = vld [vmem:[#allocation2 + $0x90] sm:$0xff]
    %v51 = vld [vmem:[#allocation2 + $0x98] sm:$0xff]
    %v52 = vld [vmem:[#allocation2 + $0xa0] sm:$0xff]
    %v53 = vld [vmem:[#allocation2 + $0xa8] sm:$0xff]
    %v54 = vld [vmem:[#allocation2 + $0xb0] sm:$0xff]
    %v55 = vld [vmem:[#allocation2 + $0xb8] sm:$0xff]
    %v56 = vld [vmem:[#allocation2 + $0xc0] sm:$0xff]
    %v57 = vld [vmem:[#allocation2 + $0xc8] sm:$0xff]
    %v58 = vld [vmem:[#allocation2 + $0xd0] sm:$0xff]
    %v59 = vld [vmem:[#allocation2 + $0xd8] sm:$0xff]
    %v60 = vld [vmem:[#allocation2 + $0xe0] sm:$0xff]
    %v61 = vld [vmem:[#allocation2 + $0xe8] sm:$0xff]
    %v62 = vld [vmem:[#allocation2 + $0xf0] sm:$0xff]
    %v63 = vld [vmem:[#allocation2 + $0xf8] sm:$0xff]
    %v64 = vadd.f32 %v32, %v33
    %65 = vadd.xlane.f32.xlu0 %v64
    %v66 = vpop.xlane.xlu0 %65
    %v67 = vadd.f32 %v34, %v35
    %68 = vadd.xlane.f32.xlu0 %v67
    %v69 = vpop.xlane.xlu0 %68
    %v70 = vadd.f32 %v36, %v37
    %71 = vadd.xlane.f32.xlu0 %v70
    %v72 = vpop.xlane.xlu0 %71
    %v73 = vadd.f32 %v38, %v39
    %74 = vadd.xlane.f32.xlu0 %v73
    %v75 = vpop.xlane.xlu0 %74
    %v76 = vadd.f32 %v40, %v41
    %77 = vadd.xlane.f32.xlu0 %v76
    %v78 = vpop.xlane.xlu0 %77
    %v79 = vadd.f32 %v42, %v43
    %80 = vadd.xlane.f32.xlu0 %v79
    %v81 = vpop.xlane.xlu0 %80
    %v82 = vadd.f32 %v44, %v45
    %83 = vadd.xlane.f32.xlu0 %v82
    %v84 = vpop.xlane.xlu0 %83
    %v85 = vadd.f32 %v46, %v47
    %86 = vadd.xlane.f32.xlu0 %v85
    %v87 = vpop.xlane.xlu0 %86
    %v88 = vadd.f32 %v48, %v49
    %89 = vadd.xlane.f32.xlu0 %v88
    %v90 = vpop.xlane.xlu0 %89
    %v91 = vadd.f32 %v50, %v51
    %92 = vadd.xlane.f32.xlu0 %v91
    %v93 = vpop.xlane.xlu0 %92
    %v94 = vadd.f32 %v52, %v53
    %95 = vadd.xlane.f32.xlu0 %v94
    %v96 = vpop.xlane.xlu0 %95
    %v97 = vadd.f32 %v54, %v55
    %98 = vadd.xlane.f32.xlu0 %v97
    %v99 = vpop.xlane.xlu0 %98
    %v100 = vadd.f32 %v56, %v57
    %101 = vadd.xlane.f32.xlu0 %v100
    %v102 = vpop.xlane.xlu0 %101
    %v103 = vadd.f32 %v58, %v59
    %104 = vadd.xlane.f32.xlu0 %v103
    %v105 = vpop.xlane.xlu0 %104
    %v106 = vadd.f32 %v60, %v61
    %107 = vadd.xlane.f32.xlu0 %v106
    %v108 = vpop.xlane.xlu0 %107
    %v109 = vadd.f32 %v62, %v63
    %110 = vadd.xlane.f32.xlu0 %v109
    %v111 = vpop.xlane.xlu0 %110
    %v112 = vmax.f32 %v32, %v33
    %113 = vmax.xlane.f32.xlu0 %v112
    %v114 = vpop.xlane.xlu0 %113
    %v115 = vmax.f32 %v34, %v35
    %116 = vmax.xlane.f32.xlu0 %v115
    %v117 = vpop.xlane.xlu0 %116
    %v118 = vmax.f32 %v36, %v37
    %119 = vmax.xlane.f32.xlu0 %v118
    %v120 = vpop.xlane.xlu0 %119
    %v121 = vmax.f32 %v38, %v39
    %122 = vmax.xlane.f32.xlu0 %v121
    %v123 = vpop.xlane.xlu0 %122
    %v124 = vmax.f32 %v40, %v41
    %125 = vmax.xlane.f32.xlu0 %v124
    %v126 = vpop.xlane.xlu0 %125
    %v127 = vmax.f32 %v42, %v43
    %128 = vmax.xlane.f32.xlu0 %v127
    %v129 = vpop.xlane.xlu0 %128
    %v130 = vmax.f32 %v44, %v45
    %131 = vmax.xlane.f32.xlu0 %v130
    %v132 = vpop.xlane.xlu0 %131
    %v133 = vmax.f32 %v46, %v47
    %134 = vmax.xlane.f32.xlu0 %v133
    %v135 = vpop.xlane.xlu0 %134
    %v136 = vmax.f32 %v48, %v49
    %137 = vmax.xlane.f32.xlu0 %v136
    %v138 = vpop.xlane.xlu0 %137
    %v139 = vmax.f32 %v50, %v51
    %140 = vmax.xlane.f32.xlu0 %v139
    %v141 = vpop.xlane.xlu0 %140
    %v142 = vmax.f32 %v52, %v53
    %143 = vmax.xlane.f32.xlu0 %v142
    %v144 = vpop.xlane.xlu0 %143
    %v145 = vmax.f32 %v54, %v55
    %146 = vmax.xlane.f32.xlu0 %v145
    %v147 = vpop.xlane.xlu0 %146
    %v148 = vmax.f32 %v56, %v57
    %149 = vmax.xlane.f32.xlu0 %v148
    %v150 = vpop.xlane.xlu0 %149
    %v151 = vmax.f32 %v58, %v59
    %152 = vmax.xlane.f32.xlu0 %v151
    %v153 = vpop.xlane.xlu0 %152
    %v154 = vmax.f32 %v60, %v61
    %155 = vmax.xlane.f32.xlu0 %v154
    %v156 = vpop.xlane.xlu0 %155
    %v157 = vmax.f32 %v62, %v63
    %158 = vmax.xlane.f32.xlu0 %v157
    %v159 = vpop.xlane.xlu0 %158
    %p160 = scmp.eq.s32.totalorder 0, 0
    // Predicated region
    $region10: #{tpu_custom_call.1} parent=1 // pred_check
      %p161 = pneg %p160
    $region11: #{tpu_custom_call.1} parent=1 // pred_check_branch
      %163 = sbr.rel (%p161) target = $region13
    $region12: #{tpu_custom_call.1} parent=1 // pred_region
      %v180 = vlaneseq
      %v181 = vand.u32 %v180, 127
      %v182 = vlaneseq
      %v183 = vshrl.u32 %v182, 7
      %v184 = vsub.s32 %v181, %v183
      %v185 = vrot.slane %v66, %v184
      %v186 = vadd.s32 %v181, 4294967288
      %v187 = vlaneseq
      %v188 = vshrl.u32 %v187, 7
      %v189 = vsub.s32 %v186, %v188
      %v190 = vrot.slane %v69, %v189
      %vm191 = vcmask 130112
      %v192 = vsel %vm191, %v190, %v185
      %v193 = vadd.s32 %v181, 4294967280
      %v194 = vlaneseq
      %v195 = vshrl.u32 %v194, 7
      %v196 = vsub.s32 %v193, %v195
      %v197 = vrot.slane %v72, %v196
      %vm198 = vcmask 195712
      %v199 = vsel %vm198, %v197, %v192
      %v200 = vadd.s32 %v181, 4294967272
      %v201 = vlaneseq
      %v202 = vshrl.u32 %v201, 7
      %v203 = vsub.s32 %v200, %v202
      %v204 = vrot.slane %v75, %v203
      %vm205 = vcmask 261312
      %v206 = vsel %vm205, %v204, %v199
      %v207 = vadd.s32 %v181, 4294967264
      %v208 = vlaneseq
      %v209 = vshrl.u32 %v208, 7
      %v210 = vsub.s32 %v207, %v209
      %v211 = vrot.slane %v78, %v210
      %vm212 = vcmask 326912
      %v213 = vsel %vm212, %v211, %v206
      %v214 = vadd.s32 %v181, 4294967256
      %v215 = vlaneseq
      %v216 = vshrl.u32 %v215, 7
      %v217 = vsub.s32 %v214, %v216
      %v218 = vrot.slane %v81, %v217
      %vm219 = vcmask 392512
      %v220 = vsel %vm219, %v218, %v213
      %v221 = vadd.s32 %v181, 4294967248
      %v222 = vlaneseq
      %v223 = vshrl.u32 %v222, 7
      %v224 = vsub.s32 %v221, %v223
      %v225 = vrot.slane %v84, %v224
      %vm226 = vcmask 458112
      %v227 = vsel %vm226, %v225, %v220
      %v228 = vadd.s32 %v181, 4294967240
      %v229 = vlaneseq
      %v230 = vshrl.u32 %v229, 7
      %v231 = vsub.s32 %v228, %v230
      %v232 = vrot.slane %v87, %v231
      %vm233 = vcmask 523712
      %v234 = vsel %vm233, %v232, %v227
      %v235 = vlaneseq
      %v236 = vshrl.u32 %v235, 7
      %v237 = vsub.s32 %v181, %v236
      %v238 = vrot.slane %v90, %v237
      %v239 = vlaneseq
      %v240 = vshrl.u32 %v239, 7
      %v241 = vsub.s32 %v186, %v240
      %v242 = vrot.slane %v93, %v241
      %v243 = vsel %vm191, %v242, %v238
      %v244 = vlaneseq
      %v245 = vshrl.u32 %v244, 7
      %v246 = vsub.s32 %v193, %v245
      %v247 = vrot.slane %v96, %v246
      %v248 = vsel %vm198, %v247, %v243
      %v249 = vlaneseq
      %v250 = vshrl.u32 %v249, 7
      %v251 = vsub.s32 %v200, %v250
      %v252 = vrot.slane %v99, %v251
      %v253 = vsel %vm205, %v252, %v248
      %v254 = vlaneseq
      %v255 = vshrl.u32 %v254, 7
      %v256 = vsub.s32 %v207, %v255
      %v257 = vrot.slane %v102, %v256
      %v258 = vsel %vm212, %v257, %v253
      %v259 = vlaneseq
      %v260 = vshrl.u32 %v259, 7
      %v261 = vsub.s32 %v214, %v260
      %v262 = vrot.slane %v105, %v261
      %v263 = vsel %vm219, %v262, %v258
      %v264 = vlaneseq
      %v265 = vshrl.u32 %v264, 7
      %v266 = vsub.s32 %v221, %v265
      %v267 = vrot.slane %v108, %v266
      %v268 = vsel %vm226, %v267, %v263
      %v269 = vlaneseq
      %v270 = vshrl.u32 %v269, 7
      %v271 = vsub.s32 %v228, %v270
      %v272 = vrot.slane %v111, %v271
      %v273 = vsel %vm233, %v272, %v268
      %vm274 = vcmask 1041409
      %v275 = vsel %vm274, %v273, %v234
      %vm277 = vcmask 517120
      %278 = vst.msk [vmem:[#allocation5] sm:$0x3] %vm277, %v275
      %v295 = vlaneseq
      %v296 = vshrl.u32 %v295, 7
      %v297 = vsub.s32 %v181, %v296
      %v298 = vrot.slane %v114, %v297
      %v299 = vlaneseq
      %v300 = vshrl.u32 %v299, 7
      %v301 = vsub.s32 %v186, %v300
      %v302 = vrot.slane %v117, %v301
      %v303 = vsel %vm191, %v302, %v298
      %v304 = vlaneseq
      %v305 = vshrl.u32 %v304, 7
      %v306 = vsub.s32 %v193, %v305
      %v307 = vrot.slane %v120, %v306
      %v308 = vsel %vm198, %v307, %v303
      %v309 = vlaneseq
      %v310 = vshrl.u32 %v309, 7
      %v311 = vsub.s32 %v200, %v310
      %v312 = vrot.slane %v123, %v311
      %v313 = vsel %vm205, %v312, %v308
      %v314 = vlaneseq
      %v315 = vshrl.u32 %v314, 7
      %v316 = vsub.s32 %v207, %v315
      %v317 = vrot.slane %v126, %v316
      %v318 = vsel %vm212, %v317, %v313
      %v319 = vlaneseq
      %v320 = vshrl.u32 %v319, 7
      %v321 = vsub.s32 %v214, %v320
      %v322 = vrot.slane %v129, %v321
      %v323 = vsel %vm219, %v322, %v318
      %v324 = vlaneseq
      %v325 = vshrl.u32 %v324, 7
      %v326 = vsub.s32 %v221, %v325
      %v327 = vrot.slane %v132, %v326
      %v328 = vsel %vm226, %v327, %v323
      %v329 = vlaneseq
      %v330 = vshrl.u32 %v329, 7
      %v331 = vsub.s32 %v228, %v330
      %v332 = vrot.slane %v135, %v331
      %v333 = vsel %vm233, %v332, %v328
      %v334 = vlaneseq
      %v335 = vshrl.u32 %v334, 7
      %v336 = vsub.s32 %v181, %v335
      %v337 = vrot.slane %v138, %v336
      %v338 = vlaneseq
      %v339 = vshrl.u32 %v338, 7
      %v340 = vsub.s32 %v186, %v339
      %v341 = vrot.slane %v141, %v340
      %v342 = vsel %vm191, %v341, %v337
      %v343 = vlaneseq
      %v344 = vshrl.u32 %v343, 7
      %v345 = vsub.s32 %v193, %v344
      %v346 = vrot.slane %v144, %v345
      %v347 = vsel %vm198, %v346, %v342
      %v348 = vlaneseq
      %v349 = vshrl.u32 %v348, 7
      %v350 = vsub.s32 %v200, %v349
      %v351 = vrot.slane %v147, %v350
      %v352 = vsel %vm205, %v351, %v347
      %v353 = vlaneseq
      %v354 = vshrl.u32 %v353, 7
      %v355 = vsub.s32 %v207, %v354
      %v356 = vrot.slane %v150, %v355
      %v357 = vsel %vm212, %v356, %v352
      %v358 = vlaneseq
      %v359 = vshrl.u32 %v358, 7
      %v360 = vsub.s32 %v214, %v359
      %v361 = vrot.slane %v153, %v360
      %v362 = vsel %vm219, %v361, %v357
      %v363 = vlaneseq
      %v364 = vshrl.u32 %v363, 7
      %v365 = vsub.s32 %v221, %v364
      %v366 = vrot.slane %v156, %v365
      %v367 = vsel %vm226, %v366, %v362
      %v368 = vlaneseq
      %v369 = vshrl.u32 %v368, 7
      %v370 = vsub.s32 %v228, %v369
      %v371 = vrot.slane %v159, %v370
      %v372 = vsel %vm233, %v371, %v367
      %v373 = vsel %vm274, %v372, %v333
      %375 = vst.msk [vmem:[#allocation6] sm:$0x3] %vm277, %v373
    $region13: #{tpu_custom_call.1} parent=1 // pred_fallthru
      _
    %p376 = scmp.gt.s32.totalorder 0, 0
    // Predicated region
    $region14: #{tpu_custom_call.1} parent=1 // pred_check
      %p377 = pneg %p376
    $region15: #{tpu_custom_call.1} parent=1 // pred_check_branch
      %379 = sbr.rel (%p377) target = $region17
    $region16: #{tpu_custom_call.1} parent=1 // pred_region
      %v380 = vld [vmem:[#allocation5] sm:$0x3]
      %v397 = vlaneseq
      %v398 = vand.u32 %v397, 127
      %v399 = vlaneseq
      %v400 = vshrl.u32 %v399, 7
      %v401 = vsub.s32 %v398, %v400
      %v402 = vrot.slane %v66, %v401
      %v403 = vadd.s32 %v398, 4294967288
      %v404 = vlaneseq
      %v405 = vshrl.u32 %v404, 7
      %v406 = vsub.s32 %v403, %v405
      %v407 = vrot.slane %v69, %v406
      %vm408 = vcmask 130112
      %v409 = vsel %vm408, %v407, %v402
      %v410 = vadd.s32 %v398, 4294967280
      %v411 = vlaneseq
      %v412 = vshrl.u32 %v411, 7
      %v413 = vsub.s32 %v410, %v412
      %v414 = vrot.slane %v72, %v413
      %vm415 = vcmask 195712
      %v416 = vsel %vm415, %v414, %v409
      %v417 = vadd.s32 %v398, 4294967272
      %v418 = vlaneseq
      %v419 = vshrl.u32 %v418, 7
      %v420 = vsub.s32 %v417, %v419
      %v421 = vrot.slane %v75, %v420
      %vm422 = vcmask 261312
      %v423 = vsel %vm422, %v421, %v416
      %v424 = vadd.s32 %v398, 4294967264
      %v425 = vlaneseq
      %v426 = vshrl.u32 %v425, 7
      %v427 = vsub.s32 %v424, %v426
      %v428 = vrot.slane %v78, %v427
      %vm429 = vcmask 326912
      %v430 = vsel %vm429, %v428, %v423
      %v431 = vadd.s32 %v398, 4294967256
      %v432 = vlaneseq
      %v433 = vshrl.u32 %v432, 7
      %v434 = vsub.s32 %v431, %v433
      %v435 = vrot.slane %v81, %v434
      %vm436 = vcmask 392512
      %v437 = vsel %vm436, %v435, %v430
      %v438 = vadd.s32 %v398, 4294967248
      %v439 = vlaneseq
      %v440 = vshrl.u32 %v439, 7
      %v441 = vsub.s32 %v438, %v440
      %v442 = vrot.slane %v84, %v441
      %vm443 = vcmask 458112
      %v444 = vsel %vm443, %v442, %v437
      %v445 = vadd.s32 %v398, 4294967240
      %v446 = vlaneseq
      %v447 = vshrl.u32 %v446, 7
      %v448 = vsub.s32 %v445, %v447
      %v449 = vrot.slane %v87, %v448
      %vm450 = vcmask 523712
      %v451 = vsel %vm450, %v449, %v444
      %v452 = vlaneseq
      %v453 = vshrl.u32 %v452, 7
      %v454 = vsub.s32 %v398, %v453
      %v455 = vrot.slane %v90, %v454
      %v456 = vlaneseq
      %v457 = vshrl.u32 %v456, 7
      %v458 = vsub.s32 %v403, %v457
      %v459 = vrot.slane %v93, %v458
      %v460 = vsel %vm408, %v459, %v455
      %v461 = vlaneseq
      %v462 = vshrl.u32 %v461, 7
      %v463 = vsub.s32 %v410, %v462
      %v464 = vrot.slane %v96, %v463
      %v465 = vsel %vm415, %v464, %v460
      %v466 = vlaneseq
      %v467 = vshrl.u32 %v466, 7
      %v468 = vsub.s32 %v417, %v467
      %v469 = vrot.slane %v99, %v468
      %v470 = vsel %vm422, %v469, %v465
      %v471 = vlaneseq
      %v472 = vshrl.u32 %v471, 7
      %v473 = vsub.s32 %v424, %v472
      %v474 = vrot.slane %v102, %v473
      %v475 = vsel %vm429, %v474, %v470
      %v476 = vlaneseq
      %v477 = vshrl.u32 %v476, 7
      %v478 = vsub.s32 %v431, %v477
      %v479 = vrot.slane %v105, %v478
      %v480 = vsel %vm436, %v479, %v475
      %v481 = vlaneseq
      %v482 = vshrl.u32 %v481, 7
      %v483 = vsub.s32 %v438, %v482
      %v484 = vrot.slane %v108, %v483
      %v485 = vsel %vm443, %v484, %v480
      %v486 = vlaneseq
      %v487 = vshrl.u32 %v486, 7
      %v488 = vsub.s32 %v445, %v487
      %v489 = vrot.slane %v111, %v488
      %v490 = vsel %vm450, %v489, %v485
      %vm491 = vcmask 1041409
      %v492 = vsel %vm491, %v490, %v451
      %v494 = vadd.f32 %v380, %v492
      %vm495 = vcmask 517120
      %496 = vst.msk [vmem:[#allocation5] sm:$0x3] %vm495, %v494
      %v497 = vld [vmem:[#allocation6] sm:$0x3]
      %v514 = vlaneseq
      %v515 = vshrl.u32 %v514, 7
      %v516 = vsub.s32 %v398, %v515
      %v517 = vrot.slane %v114, %v516
      %v518 = vlaneseq
      %v519 = vshrl.u32 %v518, 7
      %v520 = vsub.s32 %v403, %v519
      %v521 = vrot.slane %v117, %v520
      %v522 = vsel %vm408, %v521, %v517
      %v523 = vlaneseq
      %v524 = vshrl.u32 %v523, 7
      %v525 = vsub.s32 %v410, %v524
      %v526 = vrot.slane %v120, %v525
      %v527 = vsel %vm415, %v526, %v522
      %v528 = vlaneseq
      %v529 = vshrl.u32 %v528, 7
      %v530 = vsub.s32 %v417, %v529
      %v531 = vrot.slane %v123, %v530
      %v532 = vsel %vm422, %v531, %v527
      %v533 = vlaneseq
      %v534 = vshrl.u32 %v533, 7
      %v535 = vsub.s32 %v424, %v534
      %v536 = vrot.slane %v126, %v535
      %v537 = vsel %vm429, %v536, %v532
      %v538 = vlaneseq
      %v539 = vshrl.u32 %v538, 7
      %v540 = vsub.s32 %v431, %v539
      %v541 = vrot.slane %v129, %v540
      %v542 = vsel %vm436, %v541, %v537
      %v543 = vlaneseq
      %v544 = vshrl.u32 %v543, 7
      %v545 = vsub.s32 %v438, %v544
      %v546 = vrot.slane %v132, %v545
      %v547 = vsel %vm443, %v546, %v542
      %v548 = vlaneseq
      %v549 = vshrl.u32 %v548, 7
      %v550 = vsub.s32 %v445, %v549
      %v551 = vrot.slane %v135, %v550
      %v552 = vsel %vm450, %v551, %v547
      %v553 = vlaneseq
      %v554 = vshrl.u32 %v553, 7
      %v555 = vsub.s32 %v398, %v554
      %v556 = vrot.slane %v138, %v555
      %v557 = vlaneseq
      %v558 = vshrl.u32 %v557, 7
      %v559 = vsub.s32 %v403, %v558
      %v560 = vrot.slane %v141, %v559
      %v561 = vsel %vm408, %v560, %v556
      %v562 = vlaneseq
      %v563 = vshrl.u32 %v562, 7
      %v564 = vsub.s32 %v410, %v563
      %v565 = vrot.slane %v144, %v564
      %v566 = vsel %vm415, %v565, %v561
      %v567 = vlaneseq
      %v568 = vshrl.u32 %v567, 7
      %v569 = vsub.s32 %v417, %v568
      %v570 = vrot.slane %v147, %v569
      %v571 = vsel %vm422, %v570, %v566
      %v572 = vlaneseq
      %v573 = vshrl.u32 %v572, 7
      %v574 = vsub.s32 %v424, %v573
      %v575 = vrot.slane %v150, %v574
      %v576 = vsel %vm429, %v575, %v571
      %v577 = vlaneseq
      %v578 = vshrl.u32 %v577, 7
      %v579 = vsub.s32 %v431, %v578
      %v580 = vrot.slane %v153, %v579
      %v581 = vsel %vm436, %v580, %v576
      %v582 = vlaneseq
      %v583 = vshrl.u32 %v582, 7
      %v584 = vsub.s32 %v438, %v583
      %v585 = vrot.slane %v156, %v584
      %v586 = vsel %vm443, %v585, %v581
      %v587 = vlaneseq
      %v588 = vshrl.u32 %v587, 7
      %v589 = vsub.s32 %v445, %v588
      %v590 = vrot.slane %v159, %v589
      %v591 = vsel %vm450, %v590, %v586
      %v592 = vsel %vm491, %v591, %v552
      %v594 = vmax.f32 %v497, %v592
      %595 = vst.msk [vmem:[#allocation6] sm:$0x3] %vm495, %v594
    $region17: #{tpu_custom_call.1} parent=1 // pred_fallthru
      _
    // Predicated region
    $region18: #{tpu_custom_call.1} parent=1 // pred_check
      _
    $region19: #{tpu_custom_call.1} parent=1 // pred_check_branch
      %597 = sbr.rel (0) target = $region21
    $region20: #{tpu_custom_call.1} parent=1 // pred_region
      %s599 = ssub.s32 32, 32
      %600 = vsyncadd [#allocation4], %s599
      %s602 = sshll.u32 [#allocation5], 4
      %s603 = int_to_ptr.vmem [resolvable:$true] %s602
      %605 = dma.vmem_to_hbm [thread:$0]  %s603, 32, %s1, [#allocation4]
    $region21: #{tpu_custom_call.1} parent=1 // pred_fallthru
      _
    // Predicated region
    $region22: #{tpu_custom_call.1} parent=1 // pred_check
      _
    $region23: #{tpu_custom_call.1} parent=1 // pred_check_branch
      %607 = sbr.rel (0) target = $region25
    $region24: #{tpu_custom_call.1} parent=1 // pred_region
      %s609 = ssub.s32 32, 32
      %610 = vsyncadd [#allocation7], %s609
      %s612 = sshll.u32 [#allocation6], 4
      %s613 = int_to_ptr.vmem [resolvable:$true] %s612
      %615 = dma.vmem_to_hbm [thread:$0]  %s613, 32, %s2, [#allocation7]
    $region25: #{tpu_custom_call.1} parent=1 // pred_fallthru
      _
    // Predicated region
    $region26: #{tpu_custom_call.1} parent=1 // pred_check
      _
    $region27: #{tpu_custom_call.1} parent=1 // pred_check_branch
      %617 = sbr.rel (0) target = $region29
    $region28: #{tpu_custom_call.1} parent=1 // pred_region
      %618 = dma.done [#allocation4], 32
    $region29: #{tpu_custom_call.1} parent=1 // pred_fallthru
      _
    // Predicated region
    $region30: #{tpu_custom_call.1} parent=1 // pred_check
      _
    $region31: #{tpu_custom_call.1} parent=1 // pred_check_branch
      %620 = sbr.rel (0) target = $region33
    $region32: #{tpu_custom_call.1} parent=1 // pred_region
      %621 = dma.done [#allocation7], 32
    $region33: #{tpu_custom_call.1} parent=1 // pred_fallthru
      _
    %622 = vsyncpa [#allocation3], 1
    %623 = vsyncpa [#allocation4], 1
    %624 = vsyncpa [#allocation7], 1

</llo_original>
